<compile_context>
chip_gen: v7x
topology: tpu7x:2x2x1
jax: 0.10.0
libtpu: 0.0.40
codegen_flags: <defaults>
</compile_context>

<pallas_src>
import jax
import jax.numpy as jnp
from jax import lax
from jax.experimental import pallas as pl
from jax.experimental.pallas import tpu as pltpu


def _round_up(x, m):
    return ((x + m - 1) // m) * m


def _vmem_limit_bytes():
    """Generation-aware scoped-VMEM budget: ~3/4 of physical VMEM, capped."""
    try:
        cap = int(pltpu.get_tpu_info().vmem_capacity_bytes)
    except Exception:
        cap = 64 * 1024 * 1024
    return max(32 * 1024 * 1024, min(cap * 3 // 4, 96 * 1024 * 1024))


# ======================= FastRCNNPredictor (box head) =======================

def _fastrcnn_kernel(x_ref, w1_ref, b1_ref, w2_ref, b2_ref, wh_ref, bh_ref,
                     out_ref, acc_ref):
    k = pl.program_id(1)

    @pl.when(k == 0)
    def _():
        acc_ref[...] = jnp.zeros_like(acc_ref)

    # fc1: K-tiled matmul into the f32 accumulator.
    acc_ref[...] += jnp.dot(x_ref[...], w1_ref[...],
                            preferred_element_type=jnp.float32)

    @pl.when(k == pl.num_programs(1) - 1)
    def _():
        h = jnp.maximum(acc_ref[...] + b1_ref[...], 0.0)
        h = jnp.dot(h.astype(w2_ref.dtype), w2_ref[...],
                    preferred_element_type=jnp.float32) + b2_ref[...]
        h = jnp.maximum(h, 0.0)
        # Fused cls_score | bbox_pred, lane-padded to a multiple of 128.
        y = jnp.dot(h.astype(wh_ref.dtype), wh_ref[...],
                    preferred_element_type=jnp.float32) + bh_ref[...]
        out_ref[...] = y.astype(out_ref.dtype)


def prepare_fastrcnn_params(p, num_classes, *, tile_k=1024):
    """One-time weight cast / pad / packing (hoisted out of the call path)."""
    K, mid = p["w1"].shape
    nhead = 5 * num_classes                      # num_classes + 4*num_classes
    nhead_pad = _round_up(nhead, 128)            # lane-dense fused output
    tile_k = min(tile_k, _round_up(K, 128))
    kp = _round_up(K, tile_k)

    bf = jnp.bfloat16
    w1 = p["w1"].astype(bf)
    if kp != K:
        w1 = jnp.zeros((kp, mid), bf).at[:K, :].set(w1)
    wh = (jnp.zeros((mid, nhead_pad), bf)
          .at[:, :num_classes].set(p["wc"].astype(bf))
          .at[:, num_classes:nhead].set(p["wb"].astype(bf)))
    bh = (jnp.zeros((1, nhead_pad), jnp.float32)
          .at[0, :num_classes].set(p["bc"])
          .at[0, num_classes:nhead].set(p["bb"]))
    return dict(
        w1=w1, b1=p["b1"].reshape(1, mid).astype(jnp.float32),
        w2=p["w2"].astype(bf), b2=p["b2"].reshape(1, mid).astype(jnp.float32),
        wh=wh, bh=bh,
        K=K, kp=kp, tile_k=tile_k, mid=mid,
        num_classes=num_classes, nhead=nhead, nhead_pad=nhead_pad)


def fastrcnn_predictor(x_flat, prep, *, tile_m=1024):
    """FastRCNNPredictor forward.  x_flat: (num_rois, in_channels) f32."""
    M, K = x_flat.shape
    assert K == prep["K"]
    mid, kp, tile_k = prep["mid"], prep["kp"], prep["tile_k"]
    nhead, nhead_pad = prep["nhead"], prep["nhead_pad"]
    num_classes = prep["num_classes"]

    # bf16 packs 16 rows/vreg; keep tile_m a multiple of 16 and big enough to
    # cover all ROIs so the (huge) fc1 weight streams from HBM exactly once.
    tile_m = min(tile_m, _round_up(M, 16))
    mp = _round_up(M, tile_m)

    x_b = x_flat.astype(jnp.bfloat16)
    if (mp, kp) != (M, K):
        x_b = jnp.zeros((mp, kp), jnp.bfloat16).at[:M, :K].set(x_b)

    grid = (mp // tile_m, kp // tile_k)
    flops = 2 * mp * (kp * mid + mid * mid + mid * nhead_pad)
    bytes_accessed = (grid[0] * kp * mid * 2        # w1 streamed once per M tile
                      + mp * kp * 2
                      + (mid * mid + mid * nhead_pad) * 2
                      + mp * nhead_pad * 4)

    out = pl.pallas_call(
        _fastrcnn_kernel,
        out_shape=jax.ShapeDtypeStruct((mp, nhead_pad), jnp.float32),
        grid_spec=pltpu.PrefetchScalarGridSpec(
            num_scalar_prefetch=0,
            grid=grid,
            in_specs=[
                pl.BlockSpec((tile_m, tile_k), lambda i, k: (i, k)),
                pl.BlockSpec((tile_k, mid), lambda i, k: (k, 0)),
                pl.BlockSpec((1, mid), lambda i, k: (0, 0)),
                pl.BlockSpec((mid, mid), lambda i, k: (0, 0)),
                pl.BlockSpec((1, mid), lambda i, k: (0, 0)),
                pl.BlockSpec((mid, nhead_pad), lambda i, k: (0, 0)),
                pl.BlockSpec((1, nhead_pad), lambda i, k: (0, 0)),
            ],
            out_specs=pl.BlockSpec((tile_m, nhead_pad), lambda i, k: (i, 0)),
            scratch_shapes=[pltpu.VMEM((tile_m, mid), jnp.float32)],
        ),
        compiler_params=pltpu.CompilerParams(
            dimension_semantics=("parallel", "arbitrary"),
            vmem_limit_bytes=_vmem_limit_bytes()),
        cost_estimate=pl.CostEstimate(flops=flops, transcendentals=0,
                                      bytes_accessed=bytes_accessed),
    )(x_b, prep["w1"], prep["b1"], prep["w2"], prep["b2"],
      prep["wh"], prep["bh"])

    score = out[:M, :num_classes]
    bbox = out[:M, num_classes:nhead]
    return score, bbox


# ====================== MaskRCNNPredictor (mask head) =======================

def _make_mask_head_kernel(n_conv, chans, H, W, Wp, r_blk, margin):
    """Fused mask-head body: conv1..4 + ReLU, deconv(2,2)+ReLU, 1x1 logits."""
    # 3x3 taps as row shifts on the spatially-flattened, zero-padded layout.
    shifts = [(ky - 1) * Wp + (kx - 1) for ky in range(3) for kx in range(3)]
    R = r_blk
    bf = jnp.bfloat16

    def kernel(*refs):
        x_ref, mask_ref = refs[0], refs[1]
        conv_refs = refs[2:2 + 2 * n_conv]
        wd_ref, bd_ref, wl_ref, bl_ref = refs[2 + 2 * n_conv:6 + 2 * n_conv]
        out_ref = refs[6 + 2 * n_conv]
        buf_a, buf_b, acc_ref = refs[7 + 2 * n_conv:10 + 2 * n_conv]

        mask = mask_ref[...]                      # (R, 1) bf16, 1 on interior

        # Shift margins must always read zero.  Zeroed every grid step (only a
        # few sublanes) so the kernel stays correct under megacore sharding of
        # the ROI-block axis, where each core's scratch starts uninitialized.
        for buf in (buf_a, buf_b):
            buf[:margin, :] = jnp.zeros((margin, buf.shape[1]), bf)
            buf[margin + R:, :] = jnp.zeros((margin, buf.shape[1]), bf)

        # Stage this ROI block's input (already bf16) in VMEM.
        buf_a[margin:margin + R, :chans[0]] = x_ref[...]

        # 4x (3x3 conv + ReLU): 9 shifted matmuls accumulated into an explicit
        # f32 VMEM scratch (small live vreg set; MXU accumulation path).
        src, dst = buf_a, buf_b
        for li in range(n_conv):
            w_ref = conv_refs[2 * li]
            b_ref = conv_refs[2 * li + 1]
            cin, cout = chans[li], chans[li + 1]
            acc = acc_ref.at[:, :cout]
            for t in range(9):
                s = shifts[t]
                patch = src[margin + s:margin + s + R, :cin]
                contrib = jnp.dot(patch, w_ref[t],
                                  preferred_element_type=jnp.float32)
                if t == 0:
                    acc[...] = contrib
                else:
                    acc[...] += contrib
            h = jnp.maximum(acc[...] + b_ref[...], 0.0)
            dst[margin:margin + R, :cout] = h.astype(bf) * mask   # re-zero halo
            src, dst = dst, src

        # ConvTranspose2d(k=2,s=2) + ReLU + 1x1 logits, fused.  The two sx
        # sub-pixels are batched along M into one (2R, Cd) logits matmul per sy.
        h4 = src[margin:margin + R, :chans[-1]]
        wl = wl_ref[...]
        bl = bl_ref[...]
        bd = bd_ref[...]
        for sy in range(2):
            t0 = jnp.maximum(
                jnp.dot(h4, wd_ref[2 * sy + 0],
                        preferred_element_type=jnp.float32) + bd, 0.0)
            t1 = jnp.maximum(
                jnp.dot(h4, wd_ref[2 * sy + 1],
                        preferred_element_type=jnp.float32) + bd, 0.0)
            t01 = jnp.concatenate([t0, t1], axis=0).astype(bf)     # (2R, Cd)
            lg = jnp.dot(t01, wl, preferred_element_type=jnp.float32) + bl
            out_ref[sy] = jnp.concatenate([lg[:R], lg[R:]],
                                          axis=-1).astype(out_ref.dtype)

    return kernel


def prepare_mask_params(mask_params_pt, num_classes):
    """One-time PyTorch-layout -> kernel-layout weight conversion (bf16 MXU)."""
    bf = jnp.bfloat16
    n_conv = 0
    while f"mask_fcn{n_conv + 1}" in mask_params_pt:
        n_conv += 1
    c_in = mask_params_pt["mask_fcn1"][0].shape[1]
    chans = [c_in]
    conv_ws = []
    for li in range(1, n_conv + 1):
        wpt, b = mask_params_pt[f"mask_fcn{li}"]            # (Cout, Cin, 3, 3)
        cout = wpt.shape[0]
        w9 = jnp.transpose(wpt, (2, 3, 1, 0)).reshape(9, chans[-1], cout)
        conv_ws.append((w9.astype(bf), b.reshape(1, cout).astype(jnp.float32)))
        chans.append(cout)

    wt_pt, bt = mask_params_pt["mask_conv5"]                # (Cmid, Cd, 2, 2)
    c_mid, c_dec = wt_pt.shape[0], wt_pt.shape[1]
    assert c_mid == chans[-1]
    wd = jnp.transpose(wt_pt, (2, 3, 0, 1)).reshape(4, c_mid, c_dec).astype(bf)
    bd = bt.reshape(1, c_dec).astype(jnp.float32)

    wl_pt, bl = mask_params_pt["mask_fcn_logits"]           # (ncls, Cd, 1, 1)
    ncls_pad = _round_up(num_classes, 128)
    wl = jnp.zeros((c_dec, ncls_pad), bf).at[:, :num_classes].set(
        wl_pt[:, :, 0, 0].T.astype(bf))
    blp = jnp.zeros((1, ncls_pad), jnp.float32).at[0, :num_classes].set(bl)

    return dict(n_conv=n_conv, chans=chans, conv_ws=conv_ws,
                wd=wd, bd=bd, wl=wl, bl=blp,
                c_in=c_in, c_dec=c_dec,
                num_classes=num_classes, ncls_pad=ncls_pad)


def mask_predictor(x_nhwc, prep, *, rois_per_block=8):
    """MaskRCNNPredictor forward.  x_nhwc: (N, H, W, Cin) f32 (channels-last)."""
    N, H, W, c_in = x_nhwc.shape
    assert c_in == prep["c_in"]
    bf = jnp.bfloat16

    n_conv, chans, conv_ws = prep["n_conv"], prep["chans"], prep["conv_ws"]
    wd, bd, wl, blp = prep["wd"], prep["bd"], prep["wl"], prep["bl"]
    num_classes, ncls_pad = prep["num_classes"], prep["ncls_pad"]
    c_dec = prep["c_dec"]
    c_mid = chans[-1]

    # Row stride padded to a sublane multiple so +-row 3x3 taps stay aligned.
    Wp = _round_up(W + 2, 8)
    p2 = (H + 2) * Wp

    nb = max(1, min(rois_per_block, N))
    n_roi_pad = _round_up(N, nb)
    r_blk = nb * p2                              # multiple of 8 (Wp is)
    margin = Wp + 8                              # > Wp+1 and a sublane multiple

    # One-time spatial zero-pad + flatten of the (small) input, in bf16.
    xp = jnp.zeros((n_roi_pad, H + 2, Wp, c_in), bf)
    xp = xp.at[:N, 1:H + 1, 1:W + 1, :].set(x_nhwc.astype(bf))
    x_flat = xp.reshape(n_roi_pad * p2, c_in)

    interior = jnp.zeros((nb, H + 2, Wp), bf)
    interior = interior.at[:, 1:H + 1, 1:W + 1].set(1.0)
    interior = interior.reshape(r_blk, 1)

    c_max = max(chans)
    c_acc = max(chans[1:])
    n_blocks = n_roi_pad // nb

    kernel = _make_mask_head_kernel(n_conv, chans, H, W, Wp, r_blk, margin)

    in_specs = [
        pl.BlockSpec((r_blk, c_in), lambda i: (i, 0)),      # ROI block
        pl.BlockSpec((r_blk, 1), lambda i: (0, 0)),         # interior mask
    ]
    inputs = [x_flat, interior]
    for w9, b in conv_ws:
        in_specs.append(pl.BlockSpec(w9.shape, lambda i: (0, 0, 0)))
        in_specs.append(pl.BlockSpec(b.shape, lambda i: (0, 0)))
        inputs.extend([w9, b])
    in_specs.extend([
        pl.BlockSpec(wd.shape, lambda i: (0, 0, 0)),
        pl.BlockSpec(bd.shape, lambda i: (0, 0)),
        pl.BlockSpec(wl.shape, lambda i: (0, 0)),
        pl.BlockSpec(blp.shape, lambda i: (0, 0)),
    ])
    inputs.extend([wd, bd, wl, blp])

    flops = 0
    for li in range(n_conv):
        flops += 2 * (n_roi_pad * p2) * 9 * chans[li] * chans[li + 1]
    flops += 2 * (n_roi_pad * p2) * 4 * (c_mid * c_dec + c_dec * ncls_pad)
    bytes_accessed = (x_flat.size * 2
                      + sum(w.size * 2 + b.size * 4 for w, b in conv_ws)
                      + wd.size * 2 + wl.size * 2
                      + 2 * n_roi_pad * p2 * 2 * ncls_pad * 2)   # bf16 output

    out = pl.pallas_call(
        kernel,
        out_shape=jax.ShapeDtypeStruct((2, n_roi_pad * p2, 2 * ncls_pad), bf),
        grid_spec=pltpu.PrefetchScalarGridSpec(
            num_scalar_prefetch=0,
            grid=(n_blocks,),
            in_specs=in_specs,
            out_specs=pl.BlockSpec((2, r_blk, 2 * ncls_pad), lambda i: (0, i, 0)),
            scratch_shapes=[
                pltpu.VMEM((r_blk + 2 * margin, c_max), bf),     # ping
                pltpu.VMEM((r_blk + 2 * margin, c_max), bf),     # pong
                pltpu.VMEM((r_blk, c_acc), jnp.float32),         # conv acc
            ],
        ),
        compiler_params=pltpu.CompilerParams(
            dimension_semantics=("parallel",),
            vmem_limit_bytes=_vmem_limit_bytes()),
        cost_estimate=pl.CostEstimate(flops=flops, transcendentals=0,
                                      bytes_accessed=bytes_accessed),
    )(*inputs)

    # (sy, N*(H+2)*Wp, [sx | logit-lanes]) -> (N, 2H, 2W, num_classes), in bf16;
    # cast to f32 only on the final, fully-sliced result.
    out = out.reshape(2, n_roi_pad, H + 2, Wp, 2, ncls_pad)
    out = out[:, :N, 1:H + 1, 1:W + 1, :, :num_classes]
    out = out.transpose(1, 2, 0, 3, 4, 5)                   # (N, H, sy, W, sx, c)
    out = out.reshape(N, 2 * H, 2 * W, num_classes)
    return out.astype(jnp.float32)


# ----------------------- references (same bf16/f32 math) --------------------

def ref_fastrcnn(x_flat, p):
    f32, bf = jnp.float32, jnp.bfloat16
    h = jnp.dot(x_flat.astype(bf), p["w1"].astype(bf),
                preferred_element_type=f32) + p["b1"]
    h = jnp.maximum(h, 0.0)
    h = jnp.dot(h.astype(bf), p["w2"].astype(bf),
                preferred_element_type=f32) + p["b2"]
    h = jnp.maximum(h, 0.0)
    score = jnp.dot(h.astype(bf), p["wc"].astype(bf),
                    preferred_element_type=f32) + p["bc"]
    bbox = jnp.dot(h.astype(bf), p["wb"].astype(bf),
                   preferred_element_type=f32) + p["bb"]
    return score, bbox


def ref_mask_predictor(x_nhwc, mask_params_pt, num_classes):
    f32, bf = jnp.float32, jnp.bfloat16
    h = x_nhwc
    li = 1
    while f"mask_fcn{li}" in mask_params_pt:
        wpt, b = mask_params_pt[f"mask_fcn{li}"]
        w_hwio = jnp.transpose(wpt, (2, 3, 1, 0))
        y = lax.conv_general_dilated(
            h.astype(bf), w_hwio.astype(bf), (1, 1), ((1, 1), (1, 1)),
            dimension_numbers=("NHWC", "HWIO", "NHWC"),
            preferred_element_type=f32)
        h = jnp.maximum(y + b, 0.0)
        li += 1
    wt_pt, bt = mask_params_pt["mask_conv5"]                # (Cmid, Cd, 2, 2)
    t = jnp.einsum("nhwi,ioyx->nhwyxo", h.astype(bf), wt_pt.astype(bf),
                   preferred_element_type=f32)
    n, hh, ww = h.shape[:3]
    cd = wt_pt.shape[1]
    up = t.transpose(0, 1, 3, 2, 4, 5).reshape(n, 2 * hh, 2 * ww, cd)
    up = jnp.maximum(up + bt, 0.0)
    wl_pt, bl = mask_params_pt["mask_fcn_logits"]
    logits = jnp.einsum("nhwc,co->nhwo", up.astype(bf),
                        wl_pt[:, :, 0, 0].T.astype(bf),
                        preferred_element_type=f32) + bl
    return logits


# --------------------------------- main --------------------------------------

def kaiming_conv(key, cout, cin, kh, kw):
    std = (2.0 / (cout * kh * kw)) ** 0.5
    return std * jax.random.normal(key, (cout, cin, kh, kw), jnp.float32)


if __name__ == "__main__":
    key = jax.random.PRNGKey(0)
    keys = iter(jax.random.split(key, 40))

    num_classes = 5

    # ---------------- FastRCNNPredictor (box head) ----------------
    # Real model: in_channels = 2048*7*7, mid = 1024.  Small: 16*4*4, 32.
    roi_c, roi_h, roi_w = 16, 4, 4
    in_channels = roi_c * roi_h * roi_w          # 256
    mid_channels = 32
    n_box_rois = 16

    box_p = dict(
        w1=0.05 * jax.random.normal(next(keys), (in_channels, mid_channels), jnp.float32),
        b1=0.01 * jax.random.normal(next(keys), (mid_channels,), jnp.float32),
        w2=0.05 * jax.random.normal(next(keys), (mid_channels, mid_channels), jnp.float32),
        b2=0.01 * jax.random.normal(next(keys), (mid_channels,), jnp.float32),
        wc=0.05 * jax.random.normal(next(keys), (mid_channels, num_classes), jnp.float32),
        bc=0.01 * jax.random.normal(next(keys), (num_classes,), jnp.float32),
        wb=0.05 * jax.random.normal(next(keys), (mid_channels, 4 * num_classes), jnp.float32),
        bb=0.01 * jax.random.normal(next(keys), (4 * num_classes,), jnp.float32),
    )

    # ---------------- MaskRCNNPredictor (mask head) ----------------
    # Real model: in=2048, layers=(256,)*4, dim_reduced=256, 14x14 ROIs.
    # Small: in=16, layers=(16,)*4, dim_reduced=16, 8x8 ROIs.
    mask_cin = 16
    mask_layers = (16, 16, 16, 16)
    dim_reduced = 16
    n_mask_rois, mh, mw = 4, 8, 8

    mask_p_pt = {}                               # PyTorch-layout weights
    cprev = mask_cin
    for li, cout in enumerate(mask_layers, 1):
        wpt = kaiming_conv(next(keys), cout, cprev, 3, 3)     # (Cout,Cin,3,3)
        b = 0.01 * jax.random.normal(next(keys), (cout,), jnp.float32)
        mask_p_pt[f"mask_fcn{li}"] = (wpt, b)
        cprev = cout
    std_t = (2.0 / (dim_reduced * 4)) ** 0.5
    wt_pt = std_t * jax.random.normal(next(keys), (cprev, dim_reduced, 2, 2), jnp.float32)
    bt = 0.01 * jax.random.normal(next(keys), (dim_reduced,), jnp.float32)
    mask_p_pt["mask_conv5"] = (wt_pt, bt)
    wl_pt = kaiming_conv(next(keys), num_classes, dim_reduced, 1, 1)
    bl = 0.01 * jax.random.normal(next(keys), (num_classes,), jnp.float32)
    mask_p_pt["mask_fcn_logits"] = (wl_pt, bl)

    # ---------------- one-time weight prep (hoisted out of the call path) ----
    box_prep = prepare_fastrcnn_params(box_p, num_classes)
    mask_prep = prepare_mask_params(mask_p_pt, num_classes)

    # ---------------- inputs ----------------
    box_x_nchw = jax.random.normal(next(keys), (n_box_rois, roi_c, roi_h, roi_w), jnp.float32)
    box_x_flat = box_x_nchw.reshape(n_box_rois, -1)           # flatten(start_dim=1)

    mask_x_nchw = jax.random.normal(next(keys), (n_mask_rois, mask_cin, mh, mw), jnp.float32)
    mask_x_nhwc = jnp.transpose(mask_x_nchw, (0, 2, 3, 1))    # NCHW -> NHWC (lanes=C)

    # ---------------- run Pallas kernels ----------------
    score, bbox_delta = fastrcnn_predictor(box_x_flat, box_prep)
    mask_logits = mask_predictor(mask_x_nhwc, mask_prep, rois_per_block=8)
    jax.block_until_ready((score, bbox_delta, mask_logits))

    # ---------------- verify vs plain-JAX references ----------------
    score_ref, bbox_ref = ref_fastrcnn(box_x_flat, box_p)
    mask_ref = ref_mask_predictor(mask_x_nhwc, mask_p_pt, num_classes)
    assert score.shape == (n_box_rois, num_classes)
    assert bbox_delta.shape == (n_box_rois, 4 * num_classes)
    assert mask_logits.shape == (n_mask_rois, 2 * mh, 2 * mw, num_classes)
    assert bool(jnp.allclose(score, score_ref, rtol=1e-2, atol=1e-2))
    assert bool(jnp.allclose(bbox_delta, bbox_ref, rtol=1e-2, atol=1e-2))
    assert bool(jnp.allclose(mask_logits, mask_ref, rtol=1e-2, atol=1e-2))

    print("KERNEL_OK")
</pallas_src>

<mosaic_0001>
module attributes {stable_mosaic.version = 11 : i64} {
  func.func @_fastrcnn_kernel(%arg0: i32, %arg1: i32, %arg2: memref<16x256xbf16, #tpu.memory_space<vmem>>, %arg3: memref<256x32xbf16, #tpu.memory_space<vmem>>, %arg4: memref<1x32xf32, #tpu.memory_space<vmem>>, %arg5: memref<32x32xbf16, #tpu.memory_space<vmem>>, %arg6: memref<1x32xf32, #tpu.memory_space<vmem>>, %arg7: memref<32x128xbf16, #tpu.memory_space<vmem>>, %arg8: memref<1x128xf32, #tpu.memory_space<vmem>>, %arg9: memref<16x128xf32, #tpu.memory_space<vmem>>, %arg10: memref<16x32xf32, #tpu.memory_space<vmem>>) attributes {dimension_semantics = [#tpu.dimension_semantics<parallel>, #tpu.dimension_semantics<arbitrary>], iteration_bounds = array<i64: 1, 1>, scalar_prefetch = 0 : i64, scratch_operands = 1 : i64, tpu.core_type = #tpu.core_type<tc>, window_params = [{transform_indices = @transform_0, window_bounds = array<i64: 16, 256>}, {transform_indices = @transform_1, window_bounds = array<i64: 256, 32>}, {pipeline_mode = #tpu.pipeline_mode<synchronous>, transform_indices = @transform_2, window_bounds = array<i64: 1, 32>}, {pipeline_mode = #tpu.pipeline_mode<synchronous>, transform_indices = @transform_3, window_bounds = array<i64: 32, 32>}, {pipeline_mode = #tpu.pipeline_mode<synchronous>, transform_indices = @transform_4, window_bounds = array<i64: 1, 32>}, {pipeline_mode = #tpu.pipeline_mode<synchronous>, transform_indices = @transform_5, window_bounds = array<i64: 32, 128>}, {pipeline_mode = #tpu.pipeline_mode<synchronous>, transform_indices = @transform_6, window_bounds = array<i64: 1, 128>}, {transform_indices = @transform_7, window_bounds = array<i64: 16, 128>}]} {
    %c0_i32 = arith.constant 0 : i32
    %0 = arith.cmpi eq, %arg1, %c0_i32 : i32
    %1 = arith.extui %0 : i1 to i32
    %c0_i32_0 = arith.constant 0 : i32
    %2 = arith.cmpi ne, %1, %c0_i32_0 : i32
    scf.if %2 {
      %cst_10 = arith.constant 0.000000e+00 : f32
      %12 = vector.broadcast %cst_10 : f32 to vector<16x32xf32>
      %c0_11 = arith.constant 0 : index
      %c0_12 = arith.constant 0 : index
      %13 = vector.load %arg10[%c0_11, %c0_12] : memref<16x32xf32, #tpu.memory_space<vmem>>, vector<16x32xf32>
      tpu.vector_store %arg10[%c0_11, %c0_12], %12 {strides = array<i32>} : memref<16x32xf32, #tpu.memory_space<vmem>>, vector<16x32xf32>,
    } else {
    }
    %c0 = arith.constant 0 : index
    %c0_1 = arith.constant 0 : index
    %3 = vector.load %arg10[%c0, %c0_1] : memref<16x32xf32, #tpu.memory_space<vmem>>, vector<16x32xf32>
    %c0_2 = arith.constant 0 : index
    %c0_3 = arith.constant 0 : index
    %4 = vector.load %arg2[%c0_2, %c0_3] : memref<16x256xbf16, #tpu.memory_space<vmem>>, vector<16x256xbf16>
    %c0_4 = arith.constant 0 : index
    %c0_5 = arith.constant 0 : index
    %5 = vector.load %arg3[%c0_4, %c0_5] : memref<256x32xbf16, #tpu.memory_space<vmem>>, vector<256x32xbf16>
    %cst = arith.constant dense<0.000000e+00> : vector<16x32xf32>
    %6 = tpu.matmul %4, %5, %cst {dimension_numbers = #tpu.dot_dimension_numbers<[1], [0], [0], [1], [0, 0, 1, 1], [], []>} : vector<16x256xbf16>, vector<256x32xbf16>, vector<16x32xf32> -> vector<16x32xf32>
    %7 = arith.addf %3, %6 : vector<16x32xf32>
    %c0_6 = arith.constant 0 : index
    %c0_7 = arith.constant 0 : index
    %8 = vector.load %arg10[%c0_6, %c0_7] : memref<16x32xf32, #tpu.memory_space<vmem>>, vector<16x32xf32>
    tpu.vector_store %arg10[%c0_6, %c0_7], %7 {strides = array<i32>} : memref<16x32xf32, #tpu.memory_space<vmem>>, vector<16x32xf32>,
    %c0_i32_8 = arith.constant 0 : i32
    %9 = arith.cmpi eq, %arg1, %c0_i32_8 : i32
    %10 = arith.extui %9 : i1 to i32
    %c0_i32_9 = arith.constant 0 : i32
    %11 = arith.cmpi ne, %10, %c0_i32_9 : i32
    scf.if %11 {
      %c0_10 = arith.constant 0 : index
      %c0_11 = arith.constant 0 : index
      %12 = vector.load %arg10[%c0_10, %c0_11] : memref<16x32xf32, #tpu.memory_space<vmem>>, vector<16x32xf32>
      %c0_12 = arith.constant 0 : index
      %c0_13 = arith.constant 0 : index
      %13 = vector.load %arg4[%c0_12, %c0_13] : memref<1x32xf32, #tpu.memory_space<vmem>>, vector<1x32xf32>
      %14 = vector.broadcast %13 : vector<1x32xf32> to vector<16x32xf32>
      %15 = arith.addf %12, %14 : vector<16x32xf32>
      %cst_14 = arith.constant 0.000000e+00 : f32
      %16 = vector.broadcast %cst_14 : f32 to vector<16x32xf32>
      %17 = arith.maximumf %15, %16 : vector<16x32xf32>
      %18 = arith.truncf %17 : vector<16x32xf32> to vector<16x32xbf16>
      %c0_15 = arith.constant 0 : index
      %c0_16 = arith.constant 0 : index
      %19 = vector.load %arg5[%c0_15, %c0_16] : memref<32x32xbf16, #tpu.memory_space<vmem>>, vector<32x32xbf16>
      %cst_17 = arith.constant dense<0.000000e+00> : vector<16x32xf32>
      %20 = tpu.matmul %18, %19, %cst_17 {dimension_numbers = #tpu.dot_dimension_numbers<[1], [0], [0], [1], [0, 0, 1, 1], [], []>} : vector<16x32xbf16>, vector<32x32xbf16>, vector<16x32xf32> -> vector<16x32xf32>
      %c0_18 = arith.constant 0 : index
      %c0_19 = arith.constant 0 : index
      %21 = vector.load %arg6[%c0_18, %c0_19] : memref<1x32xf32, #tpu.memory_space<vmem>>, vector<1x32xf32>
      %22 = vector.broadcast %21 : vector<1x32xf32> to vector<16x32xf32>
      %23 = arith.addf %20, %22 : vector<16x32xf32>
      %cst_20 = arith.constant 0.000000e+00 : f32
      %24 = vector.broadcast %cst_20 : f32 to vector<16x32xf32>
      %25 = arith.maximumf %23, %24 : vector<16x32xf32>
      %26 = arith.truncf %25 : vector<16x32xf32> to vector<16x32xbf16>
      %c0_21 = arith.constant 0 : index
      %c0_22 = arith.constant 0 : index
      %27 = vector.load %arg7[%c0_21, %c0_22] : memref<32x128xbf16, #tpu.memory_space<vmem>>, vector<32x128xbf16>
      %cst_23 = arith.constant dense<0.000000e+00> : vector<16x128xf32>
      %28 = tpu.matmul %26, %27, %cst_23 {dimension_numbers = #tpu.dot_dimension_numbers<[1], [0], [0], [1], [0, 0, 1, 1], [], []>} : vector<16x32xbf16>, vector<32x128xbf16>, vector<16x128xf32> -> vector<16x128xf32>
      %c0_24 = arith.constant 0 : index
      %c0_25 = arith.constant 0 : index
      %29 = vector.load %arg8[%c0_24, %c0_25] : memref<1x128xf32, #tpu.memory_space<vmem>>, vector<1x128xf32>
      %30 = vector.broadcast %29 : vector<1x128xf32> to vector<16x128xf32>
      %31 = arith.addf %28, %30 : vector<16x128xf32>
      %c0_26 = arith.constant 0 : index
      %c0_27 = arith.constant 0 : index
      %32 = vector.load %arg9[%c0_26, %c0_27] : memref<16x128xf32, #tpu.memory_space<vmem>>, vector<16x128xf32>
      tpu.vector_store %arg9[%c0_26, %c0_27], %31 {strides = array<i32>} : memref<16x128xf32, #tpu.memory_space<vmem>>, vector<16x128xf32>,
    } else {
    }
    return
  }
  func.func @transform_0(%arg0: i32, %arg1: i32) -> (i32, i32) {
    %c0_i32 = arith.constant 0 : i32
    return %arg0, %arg1 : i32, i32
  }
  func.func @transform_1(%arg0: i32, %arg1: i32) -> (i32, i32) {
    %c0_i32 = arith.constant 0 : i32
    %c0_i32_0 = arith.constant 0 : i32
    return %arg1, %c0_i32 : i32, i32
  }
  func.func @transform_2(%arg0: i32, %arg1: i32) -> (i32, i32) {
    %c0_i32 = arith.constant 0 : i32
    %c0_i32_0 = arith.constant 0 : i32
    %c0_i32_1 = arith.constant 0 : i32
    return %c0_i32, %c0_i32_0 : i32, i32
  }
  func.func @transform_3(%arg0: i32, %arg1: i32) -> (i32, i32) {
    %c0_i32 = arith.constant 0 : i32
    %c0_i32_0 = arith.constant 0 : i32
    %c0_i32_1 = arith.constant 0 : i32
    return %c0_i32, %c0_i32_0 : i32, i32
  }
  func.func @transform_4(%arg0: i32, %arg1: i32) -> (i32, i32) {
    %c0_i32 = arith.constant 0 : i32
    %c0_i32_0 = arith.constant 0 : i32
    %c0_i32_1 = arith.constant 0 : i32
    return %c0_i32, %c0_i32_0 : i32, i32
  }
  func.func @transform_5(%arg0: i32, %arg1: i32) -> (i32, i32) {
    %c0_i32 = arith.constant 0 : i32
    %c0_i32_0 = arith.constant 0 : i32
    %c0_i32_1 = arith.constant 0 : i32
    return %c0_i32, %c0_i32_0 : i32, i32
  }
  func.func @transform_6(%arg0: i32, %arg1: i32) -> (i32, i32) {
    %c0_i32 = arith.constant 0 : i32
    %c0_i32_0 = arith.constant 0 : i32
    %c0_i32_1 = arith.constant 0 : i32
    return %c0_i32, %c0_i32_0 : i32, i32
  }
  func.func @transform_7(%arg0: i32, %arg1: i32) -> (i32, i32) {
    %c0_i32 = arith.constant 0 : i32
    %c0_i32_0 = arith.constant 0 : i32
    return %arg0, %c0_i32 : i32, i32
  }
}

</mosaic_0001>

<llo_original>
// kernel: tpu_custom_call.1
$region0: #{tpu_custom_call.1}
  #allocation0 [shape = 'u32[]', space=smem, size = 0x4, offset = 0x4, fixed_abs, tag = 'smem constant byte address 0x4 - core index']
  #allocation1 [shape = 'u32[144,128]{1,0:T(1,128)}', space=vmem, size = 0x12000, scoped, tag = 'internal scratch']
  #allocation2 [shape = 'f32[16,32]{1,0:T(8,128)}', space=vmem, size = 0x2000, scoped, tag = 'scratch operand']
  %s0 = inlined_call_operand.vmem [shape: bf16[16,256], index: 0, kind: input, shape index: {}]
  %s1 = inlined_call_operand.vmem [shape: bf16[256,32], index: 1, kind: input, shape index: {}]
  %s2 = inlined_call_operand.vmem [shape: f32[1,32], index: 2, kind: input, shape index: {}]
  %s3 = inlined_call_operand.vmem [shape: bf16[32,32], index: 3, kind: input, shape index: {}]
  %s4 = inlined_call_operand.vmem [shape: f32[1,32], index: 4, kind: input, shape index: {}]
  %s5 = inlined_call_operand.vmem [shape: bf16[32,128], index: 5, kind: input, shape index: {}]
  %s6 = inlined_call_operand.vmem [shape: f32[1,128], index: 6, kind: input, shape index: {}]
  %s7 = inlined_call_operand.hbm [shape: f32[16,128], index: 7, kind: output, shape index: {}]
  %s8 = sld [smem:[#allocation0]]
  $region46: #{tpu_custom_call.1} parent=0
    _
  %s10 = ssub.s32 1, %s8
  %s11 = scalar_select 0, %s10, %s8
  $region1: #{tpu_custom_call.1} parent=0
    #allocation3 [shape = 'u8[8192]{0}', space=vmem, size = 0x2000, scoped, tag = 'output window, operand 0, single buffered']
    #allocation4 [shape = 's32[1]{0}', space=sflag, size = 0x4, scoped, tag = 'scoped memory for tpu_custom_call.1']
    %12 = vsyncpa [#allocation4], 0
    // Predicated region
    $region2: #{tpu_custom_call.1} parent=1 // pred_check
      _
    $region3: #{tpu_custom_call.1} parent=1 // pred_check_branch
      %14 = sbr.rel (0) target = $region5
    $region4: #{tpu_custom_call.1} parent=1 // pred_region
      _
    $region5: #{tpu_custom_call.1} parent=1 // pred_fallthru
      _
    // Predicated region
    $region6: #{tpu_custom_call.1} parent=1 // pred_check
      _
    $region7: #{tpu_custom_call.1} parent=1 // pred_check_branch
      %16 = sbr.rel (0) target = $region9
    $region8: #{tpu_custom_call.1} parent=1 // pred_region
      _
    $region9: #{tpu_custom_call.1} parent=1 // pred_fallthru
      _
    // Predicated region
    $region10: #{tpu_custom_call.1} parent=1 // pred_check
      _
    $region11: #{tpu_custom_call.1} parent=1 // pred_check_branch
      %18 = sbr.rel (0) target = $region13
    $region12: #{tpu_custom_call.1} parent=1 // pred_region
      _
    $region13: #{tpu_custom_call.1} parent=1 // pred_fallthru
      _
    // Predicated region
    $region14: #{tpu_custom_call.1} parent=1 // pred_check
      _
    $region15: #{tpu_custom_call.1} parent=1 // pred_check_branch
      %20 = sbr.rel (0) target = $region17
    $region16: #{tpu_custom_call.1} parent=1 // pred_region
      _
    $region17: #{tpu_custom_call.1} parent=1 // pred_fallthru
      _
    // Predicated region
    $region18: #{tpu_custom_call.1} parent=1 // pred_check
      _
    $region19: #{tpu_custom_call.1} parent=1 // pred_check_branch
      %22 = sbr.rel (0) target = $region21
    $region20: #{tpu_custom_call.1} parent=1 // pred_region
      _
    $region21: #{tpu_custom_call.1} parent=1 // pred_fallthru
      _
    // Predicated region
    $region22: #{tpu_custom_call.1} parent=1 // pred_check
      _
    $region23: #{tpu_custom_call.1} parent=1 // pred_check_branch
      %24 = sbr.rel (0) target = $region25
    $region24: #{tpu_custom_call.1} parent=1 // pred_region
      _
    $region25: #{tpu_custom_call.1} parent=1 // pred_fallthru
      _
    // Predicated region
    $region26: #{tpu_custom_call.1} parent=1 // pred_check
      _
    $region27: #{tpu_custom_call.1} parent=1 // pred_check_branch
      %26 = sbr.rel (0) target = $region29
    $region28: #{tpu_custom_call.1} parent=1 // pred_region
      _
    $region29: #{tpu_custom_call.1} parent=1 // pred_fallthru
      _
    %p28 = scmp.eq.s32.totalorder 0, 0
    // Predicated region
    $region30: #{tpu_custom_call.1} parent=1 // pred_check
      %p29 = pneg %p28
    $region31: #{tpu_custom_call.1} parent=1 // pred_check_branch
      %31 = sbr.rel (%p29) target = $region33
    $region32: #{tpu_custom_call.1} parent=1 // pred_region
      %vm32 = vcmask 261120
      %33 = vst.msk [vmem:[#allocation2] sm:$0xff] %vm32, 0.0
      %34 = vst.msk [vmem:[#allocation2 + $0x8] sm:$0xff] %vm32, 0.0
    $region33: #{tpu_custom_call.1} parent=1 // pred_fallthru
      _
    %v35 = vld [vmem:[#allocation2] sm:$0xff]
    %v36 = vld [vmem:[#allocation2 + $0x8] sm:$0xff]
    %v37 = vld [vmem:[%s0] sm:$0xff]
    %v38 = vld [vmem:[%s0 + $0x8] sm:$0xff]
    %v39 = vld [vmem:[%s1] sm:$0xf]
    %v40 = vld [vmem:[%s1 + $0x4] sm:$0xf]
    %v41 = vld [vmem:[%s1 + $0x8] sm:$0xf]
    %v42 = vld [vmem:[%s1 + $0xc] sm:$0xf]
    %v43 = vld [vmem:[%s1 + $0x10] sm:$0xf]
    %v44 = vld [vmem:[%s1 + $0x14] sm:$0xf]
    %v45 = vld [vmem:[%s1 + $0x18] sm:$0xf]
    %v46 = vld [vmem:[%s1 + $0x1c] sm:$0xf]
    %v47 = vld [vmem:[%s1 + $0x20] sm:$0xf]
    %v48 = vld [vmem:[%s1 + $0x24] sm:$0xf]
    %v49 = vld [vmem:[%s1 + $0x28] sm:$0xf]
    %v50 = vld [vmem:[%s1 + $0x2c] sm:$0xf]
    %v51 = vld [vmem:[%s1 + $0x30] sm:$0xf]
    %v52 = vld [vmem:[%s1 + $0x34] sm:$0xf]
    %v53 = vld [vmem:[%s1 + $0x38] sm:$0xf]
    %v54 = vld [vmem:[%s1 + $0x3c] sm:$0xf]
    %v55 = vld [vmem:[%s1 + $0x40] sm:$0xf]
    %v56 = vld [vmem:[%s1 + $0x44] sm:$0xf]
    %v57 = vld [vmem:[%s1 + $0x48] sm:$0xf]
    %v58 = vld [vmem:[%s1 + $0x4c] sm:$0xf]
    %v59 = vld [vmem:[%s1 + $0x50] sm:$0xf]
    %v60 = vld [vmem:[%s1 + $0x54] sm:$0xf]
    %v61 = vld [vmem:[%s1 + $0x58] sm:$0xf]
    %v62 = vld [vmem:[%s1 + $0x5c] sm:$0xf]
    %v63 = vld [vmem:[%s1 + $0x60] sm:$0xf]
    %v64 = vld [vmem:[%s1 + $0x64] sm:$0xf]
    %v65 = vld [vmem:[%s1 + $0x68] sm:$0xf]
    %v66 = vld [vmem:[%s1 + $0x6c] sm:$0xf]
    %v67 = vld [vmem:[%s1 + $0x70] sm:$0xf]
    %v68 = vld [vmem:[%s1 + $0x74] sm:$0xf]
    %v69 = vld [vmem:[%s1 + $0x78] sm:$0xf]
    %v70 = vld [vmem:[%s1 + $0x7c] sm:$0xf]
    %v73 = vunpack.c.l.b16 %v37
    %v74 = vunpack.c.h.b16 %v37
    %v75 = vunpack.c.l.b16 %v38
    %v76 = vunpack.c.h.b16 %v38
    %v77 = vpack.c.b16 %v75, %v73
    %v78 = vpack.c.b16 %v76, %v74
    %v113 = vunpack.c.l.b16 %v39
    %v114 = vunpack.c.l.b16 %v40
    %v115 = vunpack.c.l.b16 %v41
    %v116 = vunpack.c.l.b16 %v42
    %v117 = vunpack.c.l.b16 %v43
    %v118 = vunpack.c.l.b16 %v44
    %v119 = vunpack.c.l.b16 %v45
    %v120 = vunpack.c.l.b16 %v46
    %v121 = vunpack.c.l.b16 %v47
    %v122 = vunpack.c.l.b16 %v48
    %v123 = vunpack.c.l.b16 %v49
    %v124 = vunpack.c.l.b16 %v50
    %v125 = vunpack.c.l.b16 %v51
    %v126 = vunpack.c.l.b16 %v52
    %v127 = vunpack.c.l.b16 %v53
    %v128 = vunpack.c.l.b16 %v54
    %v129 = vunpack.c.l.b16 %v55
    %v130 = vunpack.c.l.b16 %v56
    %v131 = vunpack.c.l.b16 %v57
    %v132 = vunpack.c.l.b16 %v58
    %v133 = vunpack.c.l.b16 %v59
    %v134 = vunpack.c.l.b16 %v60
    %v135 = vunpack.c.l.b16 %v61
    %v136 = vunpack.c.l.b16 %v62
    %v137 = vunpack.c.l.b16 %v63
    %v138 = vunpack.c.l.b16 %v64
    %v139 = vunpack.c.l.b16 %v65
    %v140 = vunpack.c.l.b16 %v66
    %v141 = vunpack.c.l.b16 %v67
    %v142 = vunpack.c.l.b16 %v68
    %v143 = vunpack.c.l.b16 %v69
    %v144 = vunpack.c.l.b16 %v70
    %v145 = vpack.c.b16 %v114, %v113
    %v146 = vpack.c.b16 %v116, %v115
    %v147 = vpack.c.b16 %v118, %v117
    %v148 = vpack.c.b16 %v120, %v119
    %v149 = vpack.c.b16 %v122, %v121
    %v150 = vpack.c.b16 %v124, %v123
    %v151 = vpack.c.b16 %v126, %v125
    %v152 = vpack.c.b16 %v128, %v127
    %v153 = vpack.c.b16 %v130, %v129
    %v154 = vpack.c.b16 %v132, %v131
    %v155 = vpack.c.b16 %v134, %v133
    %v156 = vpack.c.b16 %v136, %v135
    %v157 = vpack.c.b16 %v138, %v137
    %v158 = vpack.c.b16 %v140, %v139
    %v159 = vpack.c.b16 %v142, %v141
    %v160 = vpack.c.b16 %v144, %v143
    %177 = vmatprep.subr.bf16.mxu0 0
    %178 = vmatpush1.bf16.msra.mxu0 %v145
    %179 = vmatprep.subr.bf16.mxu0 0
    %180 = vmatpush1.bf16.msra.mxu0 %v146
    %181 = vmatprep.subr.bf16.mxu0 0
    %182 = vmatpush1.bf16.msra.mxu0 %v147
    %183 = vmatprep.subr.bf16.mxu0 0
    %184 = vmatpush1.bf16.msra.mxu0 %v148
    %185 = vmatprep.subr.bf16.mxu0 0
    %186 = vmatpush1.bf16.msra.mxu0 %v149
    %187 = vmatprep.subr.bf16.mxu0 0
    %188 = vmatpush1.bf16.msra.mxu0 %v150
    %189 = vmatprep.subr.bf16.mxu0 0
    %190 = vmatpush1.bf16.msra.mxu0 %v151
    %191 = vmatprep.subr.bf16.mxu0 0
    %192 = vmatpush1.bf16.msra.mxu0 %v152
    %193 = vmatprep.subr.bf16.mxu0 0
    %194 = vmatpush1.bf16.msra.mxu0 %v153
    %195 = vmatprep.subr.bf16.mxu0 0
    %196 = vmatpush1.bf16.msra.mxu0 %v154
    %197 = vmatprep.subr.bf16.mxu0 0
    %198 = vmatpush1.bf16.msra.mxu0 %v155
    %199 = vmatprep.subr.bf16.mxu0 0
    %200 = vmatpush1.bf16.msra.mxu0 %v156
    %201 = vmatprep.subr.bf16.mxu0 0
    %202 = vmatpush1.bf16.msra.mxu0 %v157
    %203 = vmatprep.subr.bf16.mxu0 0
    %204 = vmatpush1.bf16.msra.mxu0 %v158
    %205 = vmatprep.subr.bf16.mxu0 0
    %206 = vmatpush1.bf16.msra.mxu0 %v159
    %207 = vmatprep.subr.bf16.mxu0 0
    %208 = vmatpush1.bf16.msra.mxu0 %v160
    %209 = vmatprep.mubr.bf16.mxu0 %v78
    %210 = vmatmul.mubr.bf16.gmra.mrb[0].mxu0 %v77
    %v211 = vpop.f32.mrb[0].mxu0
    %v212 = vadd.f32 0.0, %v211
    %v213 = vpop.f32.mrb[0].mxu0
    %v214 = vpop.f32.mrb[0].mxu0
    %v215 = vadd.f32 0.0, %v214
    %v216 = vpop.f32.mrb[0].mxu0
    %217 = vdwg.mxu0
    %v218 = vadd.f32 %v35, %v212
    %v219 = vadd.f32 %v36, %v215
    %vm220 = vcmask 261120
    %221 = vst.msk [vmem:[#allocation2] sm:$0xff] %vm220, %v218
    %222 = vst.msk [vmem:[#allocation2 + $0x8] sm:$0xff] %vm220, %v219
    // Predicated region
    $region34: #{tpu_custom_call.1} parent=1 // pred_check
      %p223 = pneg %p28
    $region35: #{tpu_custom_call.1} parent=1 // pred_check_branch
      %225 = sbr.rel (%p223) target = $region37
    $region36: #{tpu_custom_call.1} parent=1 // pred_region
      %v226 = vld [vmem:[#allocation2] sm:$0xff]
      %v227 = vld [vmem:[#allocation2 + $0x8] sm:$0xff]
      %v228 = vld [vmem:[%s2] sm:$0x1]
      %v230 = vlaneseq
      %v231 = vshrl.u32 %v230, 7
      %v232 = vsub.s32 0, %v231
      %v233 = vrot.slane %v228, %v232
      %v235 = vadd.f32 %v226, %v233
      %v236 = vadd.f32 %v227, %v233
      %v237 = vmax.f32 %v235, 0.0
      %v238 = vmax.f32 %v236, 0.0
      %v239 = vpack.c.bf16 %v238, %v237
      %v240 = vld [vmem:[%s3] sm:$0xf]
      %v241 = vld [vmem:[%s3 + $0x4] sm:$0xf]
      %v242 = vld [vmem:[%s3 + $0x8] sm:$0xf]
      %v243 = vld [vmem:[%s3 + $0xc] sm:$0xf]
      %v244 = vld [vmem:[%s4] sm:$0x1]
      %v246 = vlaneseq
      %v247 = vshrl.u32 %v246, 7
      %v248 = vsub.s32 0, %v247
      %v249 = vrot.slane %v244, %v248
      %v255 = vunpack.c.l.b16 %v240
      %v256 = vunpack.c.l.b16 %v241
      %v257 = vunpack.c.l.b16 %v242
      %v258 = vunpack.c.l.b16 %v243
      %v259 = vpack.c.b16 %v256, %v255
      %v260 = vpack.c.b16 %v258, %v257
      %v264 = vsel %vm220, %v239, 0
      %266 = vmatprep.subr.bf16.mxu0 0
      %267 = vmatpush1.bf16.msra.mxu0 %v259
      %268 = vmatprep.subr.bf16.mxu0 0
      %269 = vmatpush1.bf16.msra.mxu0 %v260
      %270 = vmatprep.subr.bf16.mxu0 0
      %271 = vmatpush1.bf16.msra.mxu0 0
      %272 = vmatprep.subr.bf16.mxu0 0
      %273 = vmatpush1.bf16.msra.mxu0 0
      %274 = vmatprep.subr.bf16.mxu0 0
      %275 = vmatpush1.bf16.msra.mxu0 0
      %276 = vmatprep.subr.bf16.mxu0 0
      %277 = vmatpush1.bf16.msra.mxu0 0
      %278 = vmatprep.subr.bf16.mxu0 0
      %279 = vmatpush1.bf16.msra.mxu0 0
      %280 = vmatprep.subr.bf16.mxu0 0
      %281 = vmatpush1.bf16.msra.mxu0 0
      %282 = vmatprep.subr.bf16.mxu0 0
      %283 = vmatpush1.bf16.msra.mxu0 0
      %284 = vmatprep.subr.bf16.mxu0 0
      %285 = vmatpush1.bf16.msra.mxu0 0
      %286 = vmatprep.subr.bf16.mxu0 0
      %287 = vmatpush1.bf16.msra.mxu0 0
      %288 = vmatprep.subr.bf16.mxu0 0
      %289 = vmatpush1.bf16.msra.mxu0 0
      %290 = vmatprep.subr.bf16.mxu0 0
      %291 = vmatpush1.bf16.msra.mxu0 0
      %292 = vmatprep.subr.bf16.mxu0 0
      %293 = vmatpush1.bf16.msra.mxu0 0
      %294 = vmatprep.subr.bf16.mxu0 0
      %295 = vmatpush1.bf16.msra.mxu0 0
      %296 = vmatprep.subr.bf16.mxu0 0
      %297 = vmatpush1.bf16.msra.mxu0 0
      %298 = vmatprep.mubr.bf16.mxu0 0
      %299 = vmatmul.mubr.bf16.gmra.mrb[0].mxu0 %v264
      %v300 = vpop.f32.mrb[0].mxu0
      %v301 = vadd.f32 %v249, %v300
      %v302 = vpop.f32.mrb[0].mxu0
      %v303 = vpop.f32.mrb[0].mxu0
      %v304 = vadd.f32 %v249, %v303
      %v305 = vpop.f32.mrb[0].mxu0
      %306 = vdwg.mxu0
      %v307 = vmax.f32 %v301, 0.0
      %v308 = vmax.f32 %v304, 0.0
      %v309 = vpack.c.bf16 %v308, %v307
      %v310 = vld [vmem:[%s5] sm:$0xf]
      %v311 = vld [vmem:[%s5 + $0x4] sm:$0xf]
      %v312 = vld [vmem:[%s5 + $0x8] sm:$0xf]
      %v313 = vld [vmem:[%s5 + $0xc] sm:$0xf]
      %v314 = vld [vmem:[%s6] sm:$0x1]
      %v316 = vlaneseq
      %v317 = vshrl.u32 %v316, 7
      %v318 = vsub.s32 0, %v317
      %v319 = vrot.slane %v314, %v318
      %v325 = vunpack.c.l.b16 %v310
      %v326 = vunpack.c.l.b16 %v311
      %v327 = vunpack.c.l.b16 %v312
      %v328 = vunpack.c.l.b16 %v313
      %v329 = vpack.c.b16 %v326, %v325
      %v330 = vpack.c.b16 %v328, %v327
      %v334 = vsel %vm220, %v309, 0
      %336 = vmatprep.subr.bf16.mxu0 0
      %337 = vmatpush1.bf16.msra.mxu0 %v329
      %338 = vmatprep.subr.bf16.mxu0 0
      %339 = vmatpush1.bf16.msra.mxu0 %v330
      %340 = vmatprep.subr.bf16.mxu0 0
      %341 = vmatpush1.bf16.msra.mxu0 0
      %342 = vmatprep.subr.bf16.mxu0 0
      %343 = vmatpush1.bf16.msra.mxu0 0
      %344 = vmatprep.subr.bf16.mxu0 0
      %345 = vmatpush1.bf16.msra.mxu0 0
      %346 = vmatprep.subr.bf16.mxu0 0
      %347 = vmatpush1.bf16.msra.mxu0 0
      %348 = vmatprep.subr.bf16.mxu0 0
      %349 = vmatpush1.bf16.msra.mxu0 0
      %350 = vmatprep.subr.bf16.mxu0 0
      %351 = vmatpush1.bf16.msra.mxu0 0
      %352 = vmatprep.subr.bf16.mxu0 0
      %353 = vmatpush1.bf16.msra.mxu0 0
      %354 = vmatprep.subr.bf16.mxu0 0
      %355 = vmatpush1.bf16.msra.mxu0 0
      %356 = vmatprep.subr.bf16.mxu0 0
      %357 = vmatpush1.bf16.msra.mxu0 0
      %358 = vmatprep.subr.bf16.mxu0 0
      %359 = vmatpush1.bf16.msra.mxu0 0
      %360 = vmatprep.subr.bf16.mxu0 0
      %361 = vmatpush1.bf16.msra.mxu0 0
      %362 = vmatprep.subr.bf16.mxu0 0
      %363 = vmatpush1.bf16.msra.mxu0 0
      %364 = vmatprep.subr.bf16.mxu0 0
      %365 = vmatpush1.bf16.msra.mxu0 0
      %366 = vmatprep.subr.bf16.mxu0 0
      %367 = vmatpush1.bf16.msra.mxu0 0
      %368 = vmatprep.mubr.bf16.mxu0 0
      %369 = vmatmul.mubr.bf16.gmra.mrb[0].mxu0 %v334
      %v370 = vpop.f32.mrb[0].mxu0
      %v371 = vadd.f32 %v319, %v370
      %v372 = vpop.f32.mrb[0].mxu0
      %v373 = vpop.f32.mrb[0].mxu0
      %v374 = vadd.f32 %v319, %v373
      %v375 = vpop.f32.mrb[0].mxu0
      %376 = vdwg.mxu0
      %377 = vst [vmem:[#allocation3] sm:$0xff] %v371
      %378 = vst [vmem:[#allocation3 + $0x8] sm:$0xff] %v374
    $region37: #{tpu_custom_call.1} parent=1 // pred_fallthru
      _
    // Predicated region
    $region38: #{tpu_custom_call.1} parent=1 // pred_check
      _
    $region39: #{tpu_custom_call.1} parent=1 // pred_check_branch
      %380 = sbr.rel (0) target = $region41
    $region40: #{tpu_custom_call.1} parent=1 // pred_region
      %s382 = ssub.s32 256, 256
      %383 = vsyncadd [#allocation4], %s382
      %s384 = sshll.u32 [#allocation3], 4
      %s385 = int_to_ptr.vmem [resolvable:$true] %s384
      %390 = dma.vmem_to_hbm [thread:$0]  %s385, 256, %s7, [#allocation4], 128, 128, 8
    $region41: #{tpu_custom_call.1} parent=1 // pred_fallthru
      _
    // Predicated region
    $region42: #{tpu_custom_call.1} parent=1 // pred_check
      _
    $region43: #{tpu_custom_call.1} parent=1 // pred_check_branch
      %392 = sbr.rel (0) target = $region45
    $region44: #{tpu_custom_call.1} parent=1 // pred_region
      %393 = dma.done [#allocation4], 256
    $region45: #{tpu_custom_call.1} parent=1 // pred_fallthru
      _
    %394 = vsyncpa [#allocation4], 1

</llo_original>
